<compile_context>
chip_gen: v7x
topology: tpu7x:2x2x1
jax: 0.10.0
libtpu: 0.0.40
codegen_flags: <defaults>
</compile_context>

<pallas_src>
import jax
import jax.numpy as jnp
import numpy as np
from jax.experimental import pallas as pl
from jax.experimental.pallas import tpu as pltpu

PAD = 128          # lane padding for hidden dims (all hidden dims <= 128)
N_WSLAB = 4        # layers B..E packed as (4, 128, 128)
N_BROWS = 7        # 5 biases + final weight vector + final (broadcast) bias
BN_EPS = 1e-5


def _round_up(x, m):
    return (x + m - 1) // m * m


# ----------------------------------------------------------------------------
# Pallas kernel: the whole forward pass on one (tb, Din) bf16 input block.
# ----------------------------------------------------------------------------
def _nn_kernel(x_ref, w0_ref, w_ref, b_ref, out_ref):
    def bias(i):
        return b_ref[pl.ds(i, 1), :]                      # (1, 128) f32, broadcasts

    def dense_relu(h, wi, bi):
        y = jnp.dot(h.astype(jnp.bfloat16), w_ref[wi],
                    preferred_element_type=jnp.float32)   # bf16 MXU, f32 acc
        return jnp.maximum(y + bias(bi), 0.0)

    x = x_ref[...]                                        # (tb, Din) bf16, packed num||title

    # Layer A: fused first Linears of both branches (block-diagonal) + ReLU.
    h = jnp.dot(x, w0_ref[...], preferred_element_type=jnp.float32)
    h = jnp.maximum(h + bias(0), 0.0)
    # Layer B: fused second Linears of both branches (bn_n1 / bn_t1 folded) + ReLU.
    h = dense_relu(h, 0, 1)
    # Layer C: combined Linear #1 on cat([nf, tf]) (bn_n2 / bn_t2 folded) + ReLU.
    h = dense_relu(h, 1, 2)
    # Layer D: combined Linear #2 (bn_c1 folded) + ReLU.
    h = dense_relu(h, 2, 3)
    # Layer E: combined Linear #3 (bn_c2 folded) + ReLU.
    h = dense_relu(h, 3, 4)

    # Final Linear(h2 -> 1) in f32, lane-packed: out[r, l] = <h[r*128+l, :], wf> + bf.
    tb = h.shape[0]
    wf = b_ref[pl.ds(5, 1), :]                            # (1, 128) f32 final weight vector
    bf = b_ref[pl.ds(6, 1), :]                            # (1, 128) f32, every lane = cb4
    h3 = h.reshape(tb // 128, 128, 128)                   # major-dim split: layout-free
    out_ref[...] = jnp.sum(h3 * wf, axis=-1) + bf         # (tb//128, 128) lane-dense f32


# ----------------------------------------------------------------------------
# Wrapper
# ----------------------------------------------------------------------------
def numerical_plus_title_forward(numerical, title, w0, w_slab, b_slab):
    B = numerical.shape[0]
    din = numerical.shape[1] + title.shape[1]

    # Tile choice: one block for B <= 1024; otherwise 1024-row tiles so the
    # lane-packed output block is (8, 128) (sublane-legal) and the grid has
    # >= 2 steps for megacore sharding on v7x.
    Bp = _round_up(max(B, 1), 128)
    if Bp <= 1024:
        tb = Bp
    else:
        tb = 1024
        Bp = _round_up(B, tb)
    grid = (Bp // tb,)

    # Pack numerical||title into one narrow bf16 operand; pad batch only.
    x = jnp.concatenate([numerical, title], axis=1).astype(jnp.bfloat16)
    x_p = jnp.zeros((Bp, din), jnp.bfloat16).at[:B].set(x)

    flops = 2 * Bp * (din * PAD + N_WSLAB * PAD * PAD) + 2 * Bp * PAD
    bytes_accessed = (Bp * din * 2                       # packed input (bf16)
                      + din * PAD * 2                    # first-layer weights
                      + N_WSLAB * PAD * PAD * 2          # weight slab
                      + N_BROWS * PAD * 4                # bias slab
                      + (Bp // 128) * PAD * 4)           # lane-packed output

    out = pl.pallas_call(
        _nn_kernel,
        out_shape=jax.ShapeDtypeStruct((Bp // 128, PAD), jnp.float32),
        grid_spec=pltpu.PrefetchScalarGridSpec(
            num_scalar_prefetch=0,
            grid=grid,
            in_specs=[
                pl.BlockSpec((tb, din), lambda i: (i, 0)),               # packed input
                pl.BlockSpec((din, PAD), lambda i: (0, 0)),              # first-layer W (resident)
                pl.BlockSpec((N_WSLAB, PAD, PAD), lambda i: (0, 0, 0)),  # weight slab (resident)
                pl.BlockSpec((N_BROWS, PAD), lambda i: (0, 0)),          # bias slab (resident)
            ],
            out_specs=pl.BlockSpec((tb // 128, PAD), lambda i: (i, 0)),  # lane-packed preds
        ),
        compiler_params=pltpu.CompilerParams(
            dimension_semantics=("parallel",)),
        cost_estimate=pl.CostEstimate(
            flops=flops, transcendentals=0, bytes_accessed=bytes_accessed),
    )(x_p, w0, w_slab, b_slab)

    return out.reshape(-1)[:B]                            # (B,)  -- matches .squeeze()


# ----------------------------------------------------------------------------
# Parameter construction (PyTorch-style init, NON-trivial BatchNorm stats) and
# host-side folding + packing into the operands the kernel consumes.
# ----------------------------------------------------------------------------
def _linear_init(key, fan_in, fan_out):
    # nn.Linear default init; W stored as (in, out) = W_torch.T
    kw, kb = jax.random.split(key)
    bound = 1.0 / np.sqrt(fan_in)
    W = jax.random.uniform(kw, (fan_in, fan_out), jnp.float32, -bound, bound)
    b = jax.random.uniform(kb, (fan_out,), jnp.float32, -bound, bound)
    return W, b


def _bn_init(key, dim):
    kg, kb, km, kv = jax.random.split(key, 4)
    gamma = jax.random.uniform(kg, (dim,), jnp.float32, 0.5, 1.5)
    beta = jax.random.uniform(kb, (dim,), jnp.float32, -0.5, 0.5)
    mean = 0.3 * jax.random.normal(km, (dim,), jnp.float32)
    var = jax.random.uniform(kv, (dim,), jnp.float32, 0.5, 1.5)
    return gamma, beta, mean, var


def make_raw_params(key, numerical_dim, title_dim, hidden_dim):
    h2 = hidden_dim // 2
    ks = jax.random.split(key, 14)
    p = {}
    p["nW1"], p["nb1"] = _linear_init(ks[0], numerical_dim, h2)
    p["bn_n1"] = _bn_init(ks[1], h2)
    p["nW2"], p["nb2"] = _linear_init(ks[2], h2, h2)
    p["bn_n2"] = _bn_init(ks[3], h2)
    p["tW1"], p["tb1"] = _linear_init(ks[4], title_dim, hidden_dim)
    p["bn_t1"] = _bn_init(ks[5], hidden_dim)
    p["tW2"], p["tb2"] = _linear_init(ks[6], hidden_dim, hidden_dim)
    p["bn_t2"] = _bn_init(ks[7], hidden_dim)
    combined_dim = h2 + hidden_dim
    p["cW1"], p["cb1"] = _linear_init(ks[8], combined_dim, hidden_dim * 2)
    p["bn_c1"] = _bn_init(ks[9], hidden_dim * 2)
    p["cW2"], p["cb2"] = _linear_init(ks[10], hidden_dim * 2, hidden_dim)
    p["bn_c2"] = _bn_init(ks[11], hidden_dim)
    p["cW3"], p["cb3"] = _linear_init(ks[12], hidden_dim, h2)
    p["cW4"], p["cb4"] = _linear_init(ks[13], h2, 1)
    return p


def _bn_scale_shift(bn):
    gamma, beta, mean, var = bn
    scale = gamma / jnp.sqrt(var + BN_EPS)
    shift = beta - mean * scale
    return scale, shift


def _fold_into_next(bn, W, b):
    # Exact: (h*s + t) @ W + b == h @ (s[:,None]*W) + (t@W + b)
    s, t = _bn_scale_shift(bn)
    return s[:, None] * W, t @ W + b


def pack_operands(p, numerical_dim, title_dim, hidden_dim):
    h2 = hidden_dim // 2
    din = numerical_dim + title_dim
    comb = h2 + hidden_dim
    assert din <= PAD and comb <= PAD and 2 * hidden_dim <= PAD

    # Lane layout of the fused hidden state: nf -> lanes [0,h2), tf -> [h2,comb)
    # (identical to torch.cat([nf, tf], dim=1), so cW1 rows map 1:1).

    # Layer A: block-diagonal fusion of the two first Linears.
    wA = jnp.zeros((din, PAD), jnp.float32)
    wA = wA.at[:numerical_dim, 0:h2].set(p["nW1"])
    wA = wA.at[numerical_dim:, h2:comb].set(p["tW1"])
    bA = jnp.zeros((PAD,), jnp.float32).at[0:h2].set(p["nb1"]).at[h2:comb].set(p["tb1"])

    # Layer B: second Linears of both branches (bn_n1 / bn_t1 folded).
    nW2, nb2 = _fold_into_next(p["bn_n1"], p["nW2"], p["nb2"])
    tW2, tb2 = _fold_into_next(p["bn_t1"], p["tW2"], p["tb2"])
    wB = jnp.zeros((PAD, PAD), jnp.float32)
    wB = wB.at[0:h2, 0:h2].set(nW2).at[h2:comb, h2:comb].set(tW2)
    bB = jnp.zeros((PAD,), jnp.float32).at[0:h2].set(nb2).at[h2:comb].set(tb2)

    # Layer C: combined Linear #1; branch-output BNs folded into its rows.
    s_n2, t_n2 = _bn_scale_shift(p["bn_n2"])
    s_t2, t_t2 = _bn_scale_shift(p["bn_t2"])
    scale = jnp.concatenate([s_n2, s_t2])
    shift = jnp.concatenate([t_n2, t_t2])
    cW1 = scale[:, None] * p["cW1"]
    cb1 = shift @ p["cW1"] + p["cb1"]
    wC = jnp.zeros((PAD, PAD), jnp.float32).at[:comb, :2 * hidden_dim].set(cW1)
    bC = jnp.zeros((PAD,), jnp.float32).at[:2 * hidden_dim].set(cb1)

    # Layers D / E: remaining combined Linears with their preceding BNs folded.
    cW2, cb2 = _fold_into_next(p["bn_c1"], p["cW2"], p["cb2"])
    cW3, cb3 = _fold_into_next(p["bn_c2"], p["cW3"], p["cb3"])
    wD = jnp.zeros((PAD, PAD), jnp.float32).at[:2 * hidden_dim, :hidden_dim].set(cW2)
    bD = jnp.zeros((PAD,), jnp.float32).at[:hidden_dim].set(cb2)
    wE = jnp.zeros((PAD, PAD), jnp.float32).at[:hidden_dim, :h2].set(cW3)
    bE = jnp.zeros((PAD,), jnp.float32).at[:h2].set(cb3)

    # Final Linear(h2 -> 1): kept in f32 (VPU) -> weight vector + broadcast bias.
    wf = jnp.zeros((PAD,), jnp.float32).at[:h2].set(p["cW4"][:, 0])
    bf = jnp.full((PAD,), p["cb4"][0], jnp.float32)

    w0 = wA.astype(jnp.bfloat16)                                  # (din, 128) bf16
    w_slab = jnp.stack([wB, wC, wD, wE]).astype(jnp.bfloat16)     # (4, 128, 128) bf16
    b_slab = jnp.stack([bA, bB, bC, bD, bE, wf, bf])              # (7, 128) f32
    return w0, w_slab, b_slab


# ----------------------------------------------------------------------------
# References
# ----------------------------------------------------------------------------
def _reference_f32(numerical, title, p):
    # Unfolded, f32, explicit eval-mode BatchNorm (Dropout = identity).
    def bn(x, stats):
        gamma, beta, mean, var = stats
        return (x - mean) / jnp.sqrt(var + BN_EPS) * gamma + beta

    def block(x, W, b, stats):
        return bn(jnp.maximum(x @ W + b, 0.0), stats)

    nf = block(numerical, p["nW1"], p["nb1"], p["bn_n1"])
    nf = block(nf, p["nW2"], p["nb2"], p["bn_n2"])
    tf = block(title, p["tW1"], p["tb1"], p["bn_t1"])
    tf = block(tf, p["tW2"], p["tb2"], p["bn_t2"])
    comb = jnp.concatenate([nf, tf], axis=1)
    h = block(comb, p["cW1"], p["cb1"], p["bn_c1"])
    h = block(h, p["cW2"], p["cb2"], p["bn_c2"])
    h = jnp.maximum(h @ p["cW3"] + p["cb3"], 0.0)
    return (h @ p["cW4"] + p["cb4"]).reshape(-1)


def _reference_packed(numerical, title, w0, w_slab, b_slab):
    # Plain-JAX replica of the exact kernel math (folded, fused, bf16 matmuls).
    x = jnp.concatenate([numerical, title], axis=1).astype(jnp.bfloat16)
    h = jnp.dot(x, w0, preferred_element_type=jnp.float32)
    h = jnp.maximum(h + b_slab[0], 0.0)
    for wi, bi in ((0, 1), (1, 2), (2, 3), (3, 4)):
        h = jnp.dot(h.astype(jnp.bfloat16), w_slab[wi],
                    preferred_element_type=jnp.float32)
        h = jnp.maximum(h + b_slab[bi], 0.0)
    return jnp.sum(h * b_slab[5], axis=-1) + b_slab[6, 0]


if __name__ == "__main__":
    BATCH = 8
    NUMERICAL_DIM = 8
    TITLE_DIM = 24
    HIDDEN_DIM = 32

    key = jax.random.PRNGKey(0)
    k_num, k_title, k_params = jax.random.split(key, 3)

    numerical = jax.random.normal(k_num, (BATCH, NUMERICAL_DIM), jnp.float32)
    title = jax.random.normal(k_title, (BATCH, TITLE_DIM), jnp.float32)

    raw = make_raw_params(k_params, NUMERICAL_DIM, TITLE_DIM, HIDDEN_DIM)
    w0, w_slab, b_slab = pack_operands(raw, NUMERICAL_DIM, TITLE_DIM, HIDDEN_DIM)

    out = numerical_plus_title_forward(numerical, title, w0, w_slab, b_slab)
    out = jax.block_until_ready(out)
    assert out.shape == (BATCH,)

    # Structural check vs. an exact plain-JAX replica of the folded/fused math.
    ref_packed = _reference_packed(numerical, title, w0, w_slab, b_slab)
    np.testing.assert_allclose(np.asarray(out), np.asarray(ref_packed),
                               rtol=1e-3, atol=1e-3)

    # End-to-end check vs. the unfolded f32 reference with non-trivial
    # BatchNorm running stats (loose tolerance accounts for bf16 operands).
    ref_f32 = _reference_f32(numerical, title, raw)
    np.testing.assert_allclose(np.asarray(out), np.asarray(ref_f32),
                               rtol=5e-2, atol=5e-2)

    print("KERNEL_OK")
</pallas_src>

<mosaic_0001>
module attributes {stable_mosaic.version = 11 : i64} {
  func.func @_nn_kernel(%arg0: i32, %arg1: memref<128x32xbf16, #tpu.memory_space<vmem>>, %arg2: memref<32x128xbf16, #tpu.memory_space<vmem>>, %arg3: memref<4x128x128xbf16, #tpu.memory_space<vmem>>, %arg4: memref<7x128xf32, #tpu.memory_space<vmem>>, %arg5: memref<1x128xf32, #tpu.memory_space<vmem>>) attributes {dimension_semantics = [#tpu.dimension_semantics<parallel>], iteration_bounds = array<i64: 1>, scalar_prefetch = 0 : i64, scratch_operands = 0 : i64, tpu.core_type = #tpu.core_type<tc>, window_params = [{transform_indices = @transform_0, window_bounds = array<i64: 128, 32>}, {pipeline_mode = #tpu.pipeline_mode<synchronous>, transform_indices = @transform_1, window_bounds = array<i64: 32, 128>}, {pipeline_mode = #tpu.pipeline_mode<synchronous>, transform_indices = @transform_2, window_bounds = array<i64: 4, 128, 128>}, {pipeline_mode = #tpu.pipeline_mode<synchronous>, transform_indices = @transform_3, window_bounds = array<i64: 7, 128>}, {transform_indices = @transform_4, window_bounds = array<i64: 1, 128>}]} {
    %c0 = arith.constant 0 : index
    %c0_0 = arith.constant 0 : index
    %0 = vector.load %arg1[%c0, %c0_0] : memref<128x32xbf16, #tpu.memory_space<vmem>>, vector<128x32xbf16>
    %c0_1 = arith.constant 0 : index
    %c0_2 = arith.constant 0 : index
    %1 = vector.load %arg2[%c0_1, %c0_2] : memref<32x128xbf16, #tpu.memory_space<vmem>>, vector<32x128xbf16>
    %cst = arith.constant dense<0.000000e+00> : vector<128x128xf32>
    %2 = tpu.matmul %0, %1, %cst {dimension_numbers = #tpu.dot_dimension_numbers<[1], [0], [0], [1], [0, 0, 1, 1], [], []>} : vector<128x32xbf16>, vector<32x128xbf16>, vector<128x128xf32> -> vector<128x128xf32>
    %c0_3 = arith.constant 0 : index
    %c0_4 = arith.constant 0 : index
    %3 = vector.load %arg4[%c0_3, %c0_4] : memref<7x128xf32, #tpu.memory_space<vmem>>, vector<1x128xf32>
    %4 = vector.broadcast %3 : vector<1x128xf32> to vector<128x128xf32>
    %5 = arith.addf %2, %4 : vector<128x128xf32>
    %cst_5 = arith.constant 0.000000e+00 : f32
    %6 = vector.broadcast %cst_5 : f32 to vector<128x128xf32>
    %7 = arith.maximumf %5, %6 : vector<128x128xf32>
    %8 = arith.truncf %7 : vector<128x128xf32> to vector<128x128xbf16>
    %c0_6 = arith.constant 0 : index
    %c0_7 = arith.constant 0 : index
    %c0_8 = arith.constant 0 : index
    %9 = vector.load %arg3[%c0_6, %c0_7, %c0_8] : memref<4x128x128xbf16, #tpu.memory_space<vmem>>, vector<1x128x128xbf16>
    %10 = vector.shape_cast %9 : vector<1x128x128xbf16> to vector<128x128xbf16>
    %cst_9 = arith.constant dense<0.000000e+00> : vector<128x128xf32>
    %11 = tpu.matmul %8, %10, %cst_9 {dimension_numbers = #tpu.dot_dimension_numbers<[1], [0], [0], [1], [0, 0, 1, 1], [], []>} : vector<128x128xbf16>, vector<128x128xbf16>, vector<128x128xf32> -> vector<128x128xf32>
    %c1 = arith.constant 1 : index
    %c0_10 = arith.constant 0 : index
    %12 = vector.load %arg4[%c1, %c0_10] : memref<7x128xf32, #tpu.memory_space<vmem>>, vector<1x128xf32>
    %13 = vector.broadcast %12 : vector<1x128xf32> to vector<128x128xf32>
    %14 = arith.addf %11, %13 : vector<128x128xf32>
    %cst_11 = arith.constant 0.000000e+00 : f32
    %15 = vector.broadcast %cst_11 : f32 to vector<128x128xf32>
    %16 = arith.maximumf %14, %15 : vector<128x128xf32>
    %17 = arith.truncf %16 : vector<128x128xf32> to vector<128x128xbf16>
    %c1_12 = arith.constant 1 : index
    %c0_13 = arith.constant 0 : index
    %c0_14 = arith.constant 0 : index
    %18 = vector.load %arg3[%c1_12, %c0_13, %c0_14] : memref<4x128x128xbf16, #tpu.memory_space<vmem>>, vector<1x128x128xbf16>
    %19 = vector.shape_cast %18 : vector<1x128x128xbf16> to vector<128x128xbf16>
    %cst_15 = arith.constant dense<0.000000e+00> : vector<128x128xf32>
    %20 = tpu.matmul %17, %19, %cst_15 {dimension_numbers = #tpu.dot_dimension_numbers<[1], [0], [0], [1], [0, 0, 1, 1], [], []>} : vector<128x128xbf16>, vector<128x128xbf16>, vector<128x128xf32> -> vector<128x128xf32>
    %c2 = arith.constant 2 : index
    %c0_16 = arith.constant 0 : index
    %21 = vector.load %arg4[%c2, %c0_16] : memref<7x128xf32, #tpu.memory_space<vmem>>, vector<1x128xf32>
    %22 = vector.broadcast %21 : vector<1x128xf32> to vector<128x128xf32>
    %23 = arith.addf %20, %22 : vector<128x128xf32>
    %cst_17 = arith.constant 0.000000e+00 : f32
    %24 = vector.broadcast %cst_17 : f32 to vector<128x128xf32>
    %25 = arith.maximumf %23, %24 : vector<128x128xf32>
    %26 = arith.truncf %25 : vector<128x128xf32> to vector<128x128xbf16>
    %c2_18 = arith.constant 2 : index
    %c0_19 = arith.constant 0 : index
    %c0_20 = arith.constant 0 : index
    %27 = vector.load %arg3[%c2_18, %c0_19, %c0_20] : memref<4x128x128xbf16, #tpu.memory_space<vmem>>, vector<1x128x128xbf16>
    %28 = vector.shape_cast %27 : vector<1x128x128xbf16> to vector<128x128xbf16>
    %cst_21 = arith.constant dense<0.000000e+00> : vector<128x128xf32>
    %29 = tpu.matmul %26, %28, %cst_21 {dimension_numbers = #tpu.dot_dimension_numbers<[1], [0], [0], [1], [0, 0, 1, 1], [], []>} : vector<128x128xbf16>, vector<128x128xbf16>, vector<128x128xf32> -> vector<128x128xf32>
    %c3 = arith.constant 3 : index
    %c0_22 = arith.constant 0 : index
    %30 = vector.load %arg4[%c3, %c0_22] : memref<7x128xf32, #tpu.memory_space<vmem>>, vector<1x128xf32>
    %31 = vector.broadcast %30 : vector<1x128xf32> to vector<128x128xf32>
    %32 = arith.addf %29, %31 : vector<128x128xf32>
    %cst_23 = arith.constant 0.000000e+00 : f32
    %33 = vector.broadcast %cst_23 : f32 to vector<128x128xf32>
    %34 = arith.maximumf %32, %33 : vector<128x128xf32>
    %35 = arith.truncf %34 : vector<128x128xf32> to vector<128x128xbf16>
    %c3_24 = arith.constant 3 : index
    %c0_25 = arith.constant 0 : index
    %c0_26 = arith.constant 0 : index
    %36 = vector.load %arg3[%c3_24, %c0_25, %c0_26] : memref<4x128x128xbf16, #tpu.memory_space<vmem>>, vector<1x128x128xbf16>
    %37 = vector.shape_cast %36 : vector<1x128x128xbf16> to vector<128x128xbf16>
    %cst_27 = arith.constant dense<0.000000e+00> : vector<128x128xf32>
    %38 = tpu.matmul %35, %37, %cst_27 {dimension_numbers = #tpu.dot_dimension_numbers<[1], [0], [0], [1], [0, 0, 1, 1], [], []>} : vector<128x128xbf16>, vector<128x128xbf16>, vector<128x128xf32> -> vector<128x128xf32>
    %c4 = arith.constant 4 : index
    %c0_28 = arith.constant 0 : index
    %39 = vector.load %arg4[%c4, %c0_28] : memref<7x128xf32, #tpu.memory_space<vmem>>, vector<1x128xf32>
    %40 = vector.broadcast %39 : vector<1x128xf32> to vector<128x128xf32>
    %41 = arith.addf %38, %40 : vector<128x128xf32>
    %cst_29 = arith.constant 0.000000e+00 : f32
    %42 = vector.broadcast %cst_29 : f32 to vector<128x128xf32>
    %43 = arith.maximumf %41, %42 : vector<128x128xf32>
    %c5 = arith.constant 5 : index
    %c0_30 = arith.constant 0 : index
    %44 = vector.load %arg4[%c5, %c0_30] : memref<7x128xf32, #tpu.memory_space<vmem>>, vector<1x128xf32>
    %c6 = arith.constant 6 : index
    %c0_31 = arith.constant 0 : index
    %45 = vector.load %arg4[%c6, %c0_31] : memref<7x128xf32, #tpu.memory_space<vmem>>, vector<1x128xf32>
    %46 = vector.shape_cast %43 : vector<128x128xf32> to vector<1x128x128xf32>
    %47 = vector.shape_cast %44 : vector<1x128xf32> to vector<1x1x128xf32>
    %48 = vector.broadcast %47 : vector<1x1x128xf32> to vector<1x128x128xf32>
    %49 = arith.mulf %46, %48 : vector<1x128x128xf32>
    %cst_32 = arith.constant dense<0.000000e+00> : vector<1x128xf32>
    %50 = vector.multi_reduction <add>, %49, %cst_32 [2] : vector<1x128x128xf32> to vector<1x128xf32>
    %51 = arith.addf %50, %45 : vector<1x128xf32>
    %c0_33 = arith.constant 0 : index
    %c0_34 = arith.constant 0 : index
    %52 = vector.load %arg5[%c0_33, %c0_34] : memref<1x128xf32, #tpu.memory_space<vmem>>, vector<1x128xf32>
    tpu.vector_store %arg5[%c0_33, %c0_34], %51 {strides = array<i32>} : memref<1x128xf32, #tpu.memory_space<vmem>>, vector<1x128xf32>,
    return
  }
  func.func @transform_0(%arg0: i32) -> (i32, i32) {
    %c0_i32 = arith.constant 0 : i32
    %c0_i32_0 = arith.constant 0 : i32
    return %arg0, %c0_i32 : i32, i32
  }
  func.func @transform_1(%arg0: i32) -> (i32, i32) {
    %c0_i32 = arith.constant 0 : i32
    %c0_i32_0 = arith.constant 0 : i32
    %c0_i32_1 = arith.constant 0 : i32
    return %c0_i32, %c0_i32_0 : i32, i32
  }
  func.func @transform_2(%arg0: i32) -> (i32, i32, i32) {
    %c0_i32 = arith.constant 0 : i32
    %c0_i32_0 = arith.constant 0 : i32
    %c0_i32_1 = arith.constant 0 : i32
    %c0_i32_2 = arith.constant 0 : i32
    return %c0_i32, %c0_i32_0, %c0_i32_1 : i32, i32, i32
  }
  func.func @transform_3(%arg0: i32) -> (i32, i32) {
    %c0_i32 = arith.constant 0 : i32
    %c0_i32_0 = arith.constant 0 : i32
    %c0_i32_1 = arith.constant 0 : i32
    return %c0_i32, %c0_i32_0 : i32, i32
  }
  func.func @transform_4(%arg0: i32) -> (i32, i32) {
    %c0_i32 = arith.constant 0 : i32
    %c0_i32_0 = arith.constant 0 : i32
    return %arg0, %c0_i32 : i32, i32
  }
}

</mosaic_0001>

<llo_original>
// kernel: tpu_custom_call.1
$region0: #{tpu_custom_call.1}
  #allocation0 [shape = 'u32[]', space=smem, size = 0x4, offset = 0x4, fixed_abs, tag = 'smem constant byte address 0x4 - core index']
  #allocation1 [shape = 'u32[144,128]{1,0:T(1,128)}', space=vmem, size = 0x12000, scoped, tag = 'internal scratch']
  %s0 = inlined_call_operand.vmem [shape: bf16[128,32], index: 0, kind: input, shape index: {}]
  %s1 = inlined_call_operand.vmem [shape: bf16[32,128], index: 1, kind: input, shape index: {}]
  %s2 = inlined_call_operand.hbm [shape: bf16[4,128,128], index: 2, kind: input, shape index: {}]
  %s3 = inlined_call_operand.vmem [shape: f32[7,128], index: 3, kind: input, shape index: {}]
  %s4 = inlined_call_operand.hbm [shape: f32[1,128], index: 4, kind: output, shape index: {}]
  %s5 = sld [smem:[#allocation0]]
  $region30: #{tpu_custom_call.1} parent=0
    _
  %s7 = ssub.s32 1, %s5
  %s8 = scalar_select 0, %s7, %s5
  $region1: #{tpu_custom_call.1} parent=0
    #allocation2 [shape = 'u8[131072]{0}', space=vmem, size = 0x20000, scoped, tag = 'input window, operand 2, single buffered']
    #allocation3 [shape = 's32[1]{0}', space=sflag, size = 0x4, scoped, tag = 'scoped memory for tpu_custom_call.1']
    #allocation4 [shape = 's32[1]{0}', space=sflag, size = 0x4, scoped, tag = 'scoped memory for tpu_custom_call.1']
    #allocation5 [shape = 'u8[512]{0}', space=vmem, size = 0x400, scoped, tag = 'output window, operand 0, single buffered']
    %9 = vsyncpa [#allocation3], 0
    %10 = vsyncpa [#allocation4], 0
    // Predicated region
    $region2: #{tpu_custom_call.1} parent=1 // pred_check
      _
    $region3: #{tpu_custom_call.1} parent=1 // pred_check_branch
      %12 = sbr.rel (0) target = $region5
    $region4: #{tpu_custom_call.1} parent=1 // pred_region
      _
    $region5: #{tpu_custom_call.1} parent=1 // pred_fallthru
      _
    // Predicated region
    $region6: #{tpu_custom_call.1} parent=1 // pred_check
      _
    $region7: #{tpu_custom_call.1} parent=1 // pred_check_branch
      %14 = sbr.rel (0) target = $region9
    $region8: #{tpu_custom_call.1} parent=1 // pred_region
      _
    $region9: #{tpu_custom_call.1} parent=1 // pred_fallthru
      _
    // Predicated region
    $region10: #{tpu_custom_call.1} parent=1 // pred_check
      _
    $region11: #{tpu_custom_call.1} parent=1 // pred_check_branch
      %16 = sbr.rel (0) target = $region13
    $region12: #{tpu_custom_call.1} parent=1 // pred_region
      %s18 = ssub.s32 4096, 4096
      %19 = vsyncadd [#allocation3], %s18
      %s20 = sshll.u32 [#allocation2], 4
      %s21 = int_to_ptr.vmem [resolvable:$true] %s20
      %26 = dma.hbm_to_vmem [thread:$0]  %s2, 4096, %s21, [#allocation3], 64, 64, 4
    $region13: #{tpu_custom_call.1} parent=1 // pred_fallthru
      _
    // Predicated region
    $region14: #{tpu_custom_call.1} parent=1 // pred_check
      _
    $region15: #{tpu_custom_call.1} parent=1 // pred_check_branch
      %28 = sbr.rel (0) target = $region17
    $region16: #{tpu_custom_call.1} parent=1 // pred_region
      _
    $region17: #{tpu_custom_call.1} parent=1 // pred_fallthru
      _
    // Predicated region
    $region18: #{tpu_custom_call.1} parent=1 // pred_check
      _
    $region19: #{tpu_custom_call.1} parent=1 // pred_check_branch
      %30 = sbr.rel (0) target = $region21
    $region20: #{tpu_custom_call.1} parent=1 // pred_region
      %31 = dma.done [#allocation3], 4096
    $region21: #{tpu_custom_call.1} parent=1 // pred_fallthru
      _
    %v33 = vld [vmem:[%s0] sm:$0xf]
    %v34 = vld [vmem:[%s0 + $0x4] sm:$0xf]
    %v35 = vld [vmem:[%s0 + $0x8] sm:$0xf]
    %v36 = vld [vmem:[%s0 + $0xc] sm:$0xf]
    %v37 = vld [vmem:[%s0 + $0x10] sm:$0xf]
    %v38 = vld [vmem:[%s0 + $0x14] sm:$0xf]
    %v39 = vld [vmem:[%s0 + $0x18] sm:$0xf]
    %v40 = vld [vmem:[%s0 + $0x1c] sm:$0xf]
    %v41 = vld [vmem:[%s0 + $0x20] sm:$0xf]
    %v42 = vld [vmem:[%s0 + $0x24] sm:$0xf]
    %v43 = vld [vmem:[%s0 + $0x28] sm:$0xf]
    %v44 = vld [vmem:[%s0 + $0x2c] sm:$0xf]
    %v45 = vld [vmem:[%s0 + $0x30] sm:$0xf]
    %v46 = vld [vmem:[%s0 + $0x34] sm:$0xf]
    %v47 = vld [vmem:[%s0 + $0x38] sm:$0xf]
    %v48 = vld [vmem:[%s0 + $0x3c] sm:$0xf]
    %v49 = vld [vmem:[%s1] sm:$0xf]
    %v50 = vld [vmem:[%s1 + $0x4] sm:$0xf]
    %v51 = vld [vmem:[%s1 + $0x8] sm:$0xf]
    %v52 = vld [vmem:[%s1 + $0xc] sm:$0xf]
    %v53 = vld [vmem:[%s3] sm:$0x1]
    %v54 = vlaneseq
    %v55 = vshrl.u32 %v54, 7
    %v56 = vsub.s32 0, %v55
    %v57 = vrot.slane %v53, %v56
    %v74 = vunpack.c.l.b16 %v33
    %v75 = vunpack.c.l.b16 %v34
    %v76 = vunpack.c.l.b16 %v35
    %v77 = vunpack.c.l.b16 %v36
    %v78 = vunpack.c.l.b16 %v37
    %v79 = vunpack.c.l.b16 %v38
    %v80 = vunpack.c.l.b16 %v39
    %v81 = vunpack.c.l.b16 %v40
    %v82 = vunpack.c.l.b16 %v41
    %v83 = vunpack.c.l.b16 %v42
    %v84 = vunpack.c.l.b16 %v43
    %v85 = vunpack.c.l.b16 %v44
    %v86 = vunpack.c.l.b16 %v45
    %v87 = vunpack.c.l.b16 %v46
    %v88 = vunpack.c.l.b16 %v47
    %v89 = vunpack.c.l.b16 %v48
    %v90 = vpack.c.b16 %v75, %v74
    %v91 = vpack.c.b16 %v77, %v76
    %v92 = vpack.c.b16 %v79, %v78
    %v93 = vpack.c.b16 %v81, %v80
    %v94 = vpack.c.b16 %v83, %v82
    %v95 = vpack.c.b16 %v85, %v84
    %v96 = vpack.c.b16 %v87, %v86
    %v97 = vpack.c.b16 %v89, %v88
    %v102 = vunpack.c.l.b16 %v49
    %v103 = vunpack.c.l.b16 %v50
    %v104 = vunpack.c.l.b16 %v51
    %v105 = vunpack.c.l.b16 %v52
    %v106 = vpack.c.b16 %v103, %v102
    %v107 = vpack.c.b16 %v105, %v104
    %vm110 = vcmask 261120
    %v112 = vsel %vm110, %v90, 0
    %v115 = vsel %vm110, %v91, 0
    %v118 = vsel %vm110, %v92, 0
    %v121 = vsel %vm110, %v93, 0
    %v124 = vsel %vm110, %v94, 0
    %v127 = vsel %vm110, %v95, 0
    %v130 = vsel %vm110, %v96, 0
    %v133 = vsel %vm110, %v97, 0
    %135 = vmatprep.subr.bf16.mxu0 0
    %136 = vmatpush1.bf16.msra.mxu0 %v106
    %137 = vmatprep.subr.bf16.mxu0 0
    %138 = vmatpush1.bf16.msra.mxu0 %v107
    %139 = vmatprep.subr.bf16.mxu0 0
    %140 = vmatpush1.bf16.msra.mxu0 0
    %141 = vmatprep.subr.bf16.mxu0 0
    %142 = vmatpush1.bf16.msra.mxu0 0
    %143 = vmatprep.subr.bf16.mxu0 0
    %144 = vmatpush1.bf16.msra.mxu0 0
    %145 = vmatprep.subr.bf16.mxu0 0
    %146 = vmatpush1.bf16.msra.mxu0 0
    %147 = vmatprep.subr.bf16.mxu0 0
    %148 = vmatpush1.bf16.msra.mxu0 0
    %149 = vmatprep.subr.bf16.mxu0 0
    %150 = vmatpush1.bf16.msra.mxu0 0
    %151 = vmatprep.subr.bf16.mxu0 0
    %152 = vmatpush1.bf16.msra.mxu0 0
    %153 = vmatprep.subr.bf16.mxu0 0
    %154 = vmatpush1.bf16.msra.mxu0 0
    %155 = vmatprep.subr.bf16.mxu0 0
    %156 = vmatpush1.bf16.msra.mxu0 0
    %157 = vmatprep.subr.bf16.mxu0 0
    %158 = vmatpush1.bf16.msra.mxu0 0
    %159 = vmatprep.subr.bf16.mxu0 0
    %160 = vmatpush1.bf16.msra.mxu0 0
    %161 = vmatprep.subr.bf16.mxu0 0
    %162 = vmatpush1.bf16.msra.mxu0 0
    %163 = vmatprep.subr.bf16.mxu0 0
    %164 = vmatpush1.bf16.msra.mxu0 0
    %165 = vmatprep.subr.bf16.mxu0 0
    %166 = vmatpush1.bf16.msra.mxu0 0
    %167 = vmatprep.mubr.bf16.mxu0 0
    %168 = vmatmul.mubr.bf16.gmra.mrb[0].mxu0 %v112
    %v169 = vpop.f32.mrb[0].mxu0
    %v170 = vadd.f32 %v57, %v169
    %v171 = vpop.f32.mrb[0].mxu0
    %v172 = vpop.f32.mrb[0].mxu0
    %v173 = vadd.f32 %v57, %v172
    %v174 = vpop.f32.mrb[0].mxu0
    %175 = vmatprep.mubr.bf16.mxu0 0
    %176 = vmatmul.mubr.bf16.gmra.mrb[0].mxu0 %v115
    %v177 = vpop.f32.mrb[0].mxu0
    %v178 = vadd.f32 %v57, %v177
    %v179 = vpop.f32.mrb[0].mxu0
    %v180 = vpop.f32.mrb[0].mxu0
    %v181 = vadd.f32 %v57, %v180
    %v182 = vpop.f32.mrb[0].mxu0
    %183 = vmatprep.mubr.bf16.mxu0 0
    %184 = vmatmul.mubr.bf16.gmra.mrb[0].mxu0 %v118
    %v185 = vpop.f32.mrb[0].mxu0
    %v186 = vadd.f32 %v57, %v185
    %v187 = vpop.f32.mrb[0].mxu0
    %v188 = vpop.f32.mrb[0].mxu0
    %v189 = vadd.f32 %v57, %v188
    %v190 = vpop.f32.mrb[0].mxu0
    %191 = vmatprep.mubr.bf16.mxu0 0
    %192 = vmatmul.mubr.bf16.gmra.mrb[0].mxu0 %v121
    %v193 = vpop.f32.mrb[0].mxu0
    %v194 = vadd.f32 %v57, %v193
    %v195 = vpop.f32.mrb[0].mxu0
    %v196 = vpop.f32.mrb[0].mxu0
    %v197 = vadd.f32 %v57, %v196
    %v198 = vpop.f32.mrb[0].mxu0
    %199 = vmatprep.mubr.bf16.mxu0 0
    %200 = vmatmul.mubr.bf16.gmra.mrb[0].mxu0 %v124
    %v201 = vpop.f32.mrb[0].mxu0
    %v202 = vadd.f32 %v57, %v201
    %v203 = vpop.f32.mrb[0].mxu0
    %v204 = vpop.f32.mrb[0].mxu0
    %v205 = vadd.f32 %v57, %v204
    %v206 = vpop.f32.mrb[0].mxu0
    %207 = vmatprep.mubr.bf16.mxu0 0
    %208 = vmatmul.mubr.bf16.gmra.mrb[0].mxu0 %v127
    %v209 = vpop.f32.mrb[0].mxu0
    %v210 = vadd.f32 %v57, %v209
    %v211 = vpop.f32.mrb[0].mxu0
    %v212 = vpop.f32.mrb[0].mxu0
    %v213 = vadd.f32 %v57, %v212
    %v214 = vpop.f32.mrb[0].mxu0
    %215 = vmatprep.mubr.bf16.mxu0 0
    %216 = vmatmul.mubr.bf16.gmra.mrb[0].mxu0 %v130
    %v217 = vpop.f32.mrb[0].mxu0
    %v218 = vadd.f32 %v57, %v217
    %v219 = vpop.f32.mrb[0].mxu0
    %v220 = vpop.f32.mrb[0].mxu0
    %v221 = vadd.f32 %v57, %v220
    %v222 = vpop.f32.mrb[0].mxu0
    %223 = vmatprep.mubr.bf16.mxu0 0
    %224 = vmatmul.mubr.bf16.gmra.mrb[0].mxu0 %v133
    %v225 = vpop.f32.mrb[0].mxu0
    %v226 = vadd.f32 %v57, %v225
    %v227 = vpop.f32.mrb[0].mxu0
    %v228 = vpop.f32.mrb[0].mxu0
    %v229 = vadd.f32 %v57, %v228
    %v230 = vpop.f32.mrb[0].mxu0
    %231 = vdwg.mxu0
    %v232 = vmax.f32 %v170, 0.0
    %v233 = vmax.f32 %v173, 0.0
    %v234 = vmax.f32 %v178, 0.0
    %v235 = vmax.f32 %v181, 0.0
    %v236 = vmax.f32 %v186, 0.0
    %v237 = vmax.f32 %v189, 0.0
    %v238 = vmax.f32 %v194, 0.0
    %v239 = vmax.f32 %v197, 0.0
    %v240 = vmax.f32 %v202, 0.0
    %v241 = vmax.f32 %v205, 0.0
    %v242 = vmax.f32 %v210, 0.0
    %v243 = vmax.f32 %v213, 0.0
    %v244 = vmax.f32 %v218, 0.0
    %v245 = vmax.f32 %v221, 0.0
    %v246 = vmax.f32 %v226, 0.0
    %v247 = vmax.f32 %v229, 0.0
    %v248 = vpack.c.bf16 %v233, %v232
    %v249 = vpack.c.bf16 %v235, %v234
    %v250 = vpack.c.bf16 %v237, %v236
    %v251 = vpack.c.bf16 %v239, %v238
    %v252 = vpack.c.bf16 %v241, %v240
    %v253 = vpack.c.bf16 %v243, %v242
    %v254 = vpack.c.bf16 %v245, %v244
    %v255 = vpack.c.bf16 %v247, %v246
    %v256 = vld [vmem:[#allocation2] sm:$0xf]
    %v257 = vld [vmem:[#allocation2 + $0x4] sm:$0xf]
    %v258 = vld [vmem:[#allocation2 + $0x8] sm:$0xf]
    %v259 = vld [vmem:[#allocation2 + $0xc] sm:$0xf]
    %v260 = vld [vmem:[#allocation2 + $0x10] sm:$0xf]
    %v261 = vld [vmem:[#allocation2 + $0x14] sm:$0xf]
    %v262 = vld [vmem:[#allocation2 + $0x18] sm:$0xf]
    %v263 = vld [vmem:[#allocation2 + $0x1c] sm:$0xf]
    %v264 = vld [vmem:[#allocation2 + $0x20] sm:$0xf]
    %v265 = vld [vmem:[#allocation2 + $0x24] sm:$0xf]
    %v266 = vld [vmem:[#allocation2 + $0x28] sm:$0xf]
    %v267 = vld [vmem:[#allocation2 + $0x2c] sm:$0xf]
    %v268 = vld [vmem:[#allocation2 + $0x30] sm:$0xf]
    %v269 = vld [vmem:[#allocation2 + $0x34] sm:$0xf]
    %v270 = vld [vmem:[#allocation2 + $0x38] sm:$0xf]
    %v271 = vld [vmem:[#allocation2 + $0x3c] sm:$0xf]
    %v272 = vld [vmem:[%s3 + $0x1] sm:$0x1]
    %v273 = vlaneseq
    %v274 = vshrl.u32 %v273, 7
    %v275 = vsub.s32 0, %v274
    %v276 = vrot.slane %v272, %v275
    %v293 = vunpack.c.l.b16 %v256
    %v294 = vunpack.c.l.b16 %v257
    %v295 = vunpack.c.l.b16 %v258
    %v296 = vunpack.c.l.b16 %v259
    %v297 = vunpack.c.l.b16 %v260
    %v298 = vunpack.c.l.b16 %v261
    %v299 = vunpack.c.l.b16 %v262
    %v300 = vunpack.c.l.b16 %v263
    %v301 = vunpack.c.l.b16 %v264
    %v302 = vunpack.c.l.b16 %v265
    %v303 = vunpack.c.l.b16 %v266
    %v304 = vunpack.c.l.b16 %v267
    %v305 = vunpack.c.l.b16 %v268
    %v306 = vunpack.c.l.b16 %v269
    %v307 = vunpack.c.l.b16 %v270
    %v308 = vunpack.c.l.b16 %v271
    %v309 = vpack.c.b16 %v294, %v293
    %v310 = vpack.c.b16 %v296, %v295
    %v311 = vpack.c.b16 %v298, %v297
    %v312 = vpack.c.b16 %v300, %v299
    %v313 = vpack.c.b16 %v302, %v301
    %v314 = vpack.c.b16 %v304, %v303
    %v315 = vpack.c.b16 %v306, %v305
    %v316 = vpack.c.b16 %v308, %v307
    %325 = vmatprep.subr.bf16.mxu0 0
    %326 = vmatpush1.bf16.msra.mxu0 %v309
    %327 = vmatprep.subr.bf16.mxu0 0
    %328 = vmatpush1.bf16.msra.mxu0 %v310
    %329 = vmatprep.subr.bf16.mxu0 0
    %330 = vmatpush1.bf16.msra.mxu0 %v311
    %331 = vmatprep.subr.bf16.mxu0 0
    %332 = vmatpush1.bf16.msra.mxu0 %v312
    %333 = vmatprep.subr.bf16.mxu0 0
    %334 = vmatpush1.bf16.msra.mxu0 %v313
    %335 = vmatprep.subr.bf16.mxu0 0
    %336 = vmatpush1.bf16.msra.mxu0 %v314
    %337 = vmatprep.subr.bf16.mxu0 0
    %338 = vmatpush1.bf16.msra.mxu0 %v315
    %339 = vmatprep.subr.bf16.mxu0 0
    %340 = vmatpush1.bf16.msra.mxu0 %v316
    %341 = vmatprep.subr.bf16.mxu0 0
    %342 = vmatpush1.bf16.msra.mxu0 0
    %343 = vmatprep.subr.bf16.mxu0 0
    %344 = vmatpush1.bf16.msra.mxu0 0
    %345 = vmatprep.subr.bf16.mxu0 0
    %346 = vmatpush1.bf16.msra.mxu0 0
    %347 = vmatprep.subr.bf16.mxu0 0
    %348 = vmatpush1.bf16.msra.mxu0 0
    %349 = vmatprep.subr.bf16.mxu0 0
    %350 = vmatpush1.bf16.msra.mxu0 0
    %351 = vmatprep.subr.bf16.mxu0 0
    %352 = vmatpush1.bf16.msra.mxu0 0
    %353 = vmatprep.subr.bf16.mxu0 0
    %354 = vmatpush1.bf16.msra.mxu0 0
    %355 = vmatprep.subr.bf16.mxu0 0
    %356 = vmatpush1.bf16.msra.mxu0 0
    %357 = vmatprep.mubr.bf16.mxu0 0
    %358 = vmatmul.mubr.bf16.gmra.mrb[0].mxu0 %v248
    %v359 = vpop.f32.mrb[0].mxu0
    %v360 = vadd.f32 %v276, %v359
    %v361 = vpop.f32.mrb[0].mxu0
    %v362 = vpop.f32.mrb[0].mxu0
    %v363 = vadd.f32 %v276, %v362
    %v364 = vpop.f32.mrb[0].mxu0
    %365 = vmatprep.mubr.bf16.mxu0 0
    %366 = vmatmul.mubr.bf16.gmra.mrb[0].mxu0 %v249
    %v367 = vpop.f32.mrb[0].mxu0
    %v368 = vadd.f32 %v276, %v367
    %v369 = vpop.f32.mrb[0].mxu0
    %v370 = vpop.f32.mrb[0].mxu0
    %v371 = vadd.f32 %v276, %v370
    %v372 = vpop.f32.mrb[0].mxu0
    %373 = vmatprep.mubr.bf16.mxu0 0
    %374 = vmatmul.mubr.bf16.gmra.mrb[0].mxu0 %v250
    %v375 = vpop.f32.mrb[0].mxu0
    %v376 = vadd.f32 %v276, %v375
    %v377 = vpop.f32.mrb[0].mxu0
    %v378 = vpop.f32.mrb[0].mxu0
    %v379 = vadd.f32 %v276, %v378
    %v380 = vpop.f32.mrb[0].mxu0
    %381 = vmatprep.mubr.bf16.mxu0 0
    %382 = vmatmul.mubr.bf16.gmra.mrb[0].mxu0 %v251
    %v383 = vpop.f32.mrb[0].mxu0
    %v384 = vadd.f32 %v276, %v383
    %v385 = vpop.f32.mrb[0].mxu0
    %v386 = vpop.f32.mrb[0].mxu0
    %v387 = vadd.f32 %v276, %v386
    %v388 = vpop.f32.mrb[0].mxu0
    %389 = vmatprep.mubr.bf16.mxu0 0
    %390 = vmatmul.mubr.bf16.gmra.mrb[0].mxu0 %v252
    %v391 = vpop.f32.mrb[0].mxu0
    %v392 = vadd.f32 %v276, %v391
    %v393 = vpop.f32.mrb[0].mxu0
    %v394 = vpop.f32.mrb[0].mxu0
    %v395 = vadd.f32 %v276, %v394
    %v396 = vpop.f32.mrb[0].mxu0
    %397 = vmatprep.mubr.bf16.mxu0 0
    %398 = vmatmul.mubr.bf16.gmra.mrb[0].mxu0 %v253
    %v399 = vpop.f32.mrb[0].mxu0
    %v400 = vadd.f32 %v276, %v399
    %v401 = vpop.f32.mrb[0].mxu0
    %v402 = vpop.f32.mrb[0].mxu0
    %v403 = vadd.f32 %v276, %v402
    %v404 = vpop.f32.mrb[0].mxu0
    %405 = vmatprep.mubr.bf16.mxu0 0
    %406 = vmatmul.mubr.bf16.gmra.mrb[0].mxu0 %v254
    %v407 = vpop.f32.mrb[0].mxu0
    %v408 = vadd.f32 %v276, %v407
    %v409 = vpop.f32.mrb[0].mxu0
    %v410 = vpop.f32.mrb[0].mxu0
    %v411 = vadd.f32 %v276, %v410
    %v412 = vpop.f32.mrb[0].mxu0
    %413 = vmatprep.mubr.bf16.mxu0 0
    %414 = vmatmul.mubr.bf16.gmra.mrb[0].mxu0 %v255
    %v415 = vpop.f32.mrb[0].mxu0
    %v416 = vadd.f32 %v276, %v415
    %v417 = vpop.f32.mrb[0].mxu0
    %v418 = vpop.f32.mrb[0].mxu0
    %v419 = vadd.f32 %v276, %v418
    %v420 = vpop.f32.mrb[0].mxu0
    %421 = vdwg.mxu0
    %v422 = vmax.f32 %v360, 0.0
    %v423 = vmax.f32 %v363, 0.0
    %v424 = vmax.f32 %v368, 0.0
    %v425 = vmax.f32 %v371, 0.0
    %v426 = vmax.f32 %v376, 0.0
    %v427 = vmax.f32 %v379, 0.0
    %v428 = vmax.f32 %v384, 0.0
    %v429 = vmax.f32 %v387, 0.0
    %v430 = vmax.f32 %v392, 0.0
    %v431 = vmax.f32 %v395, 0.0
    %v432 = vmax.f32 %v400, 0.0
    %v433 = vmax.f32 %v403, 0.0
    %v434 = vmax.f32 %v408, 0.0
    %v435 = vmax.f32 %v411, 0.0
    %v436 = vmax.f32 %v416, 0.0
    %v437 = vmax.f32 %v419, 0.0
    %v438 = vpack.c.bf16 %v423, %v422
    %v439 = vpack.c.bf16 %v425, %v424
    %v440 = vpack.c.bf16 %v427, %v426
    %v441 = vpack.c.bf16 %v429, %v428
    %v442 = vpack.c.bf16 %v431, %v430
    %v443 = vpack.c.bf16 %v433, %v432
    %v444 = vpack.c.bf16 %v435, %v434
    %v445 = vpack.c.bf16 %v437, %v436
    %s446 = scalar_lea.vmem [#allocation2], 64
    %v447 = vld [vmem:[%s446] sm:$0xf]
    %v448 = vld [vmem:[%s446 + $0x4] sm:$0xf]
    %v449 = vld [vmem:[%s446 + $0x8] sm:$0xf]
    %v450 = vld [vmem:[%s446 + $0xc] sm:$0xf]
    %v451 = vld [vmem:[%s446 + $0x10] sm:$0xf]
    %v452 = vld [vmem:[%s446 + $0x14] sm:$0xf]
    %v453 = vld [vmem:[%s446 + $0x18] sm:$0xf]
    %v454 = vld [vmem:[%s446 + $0x1c] sm:$0xf]
    %v455 = vld [vmem:[%s446 + $0x20] sm:$0xf]
    %v456 = vld [vmem:[%s446 + $0x24] sm:$0xf]
    %v457 = vld [vmem:[%s446 + $0x28] sm:$0xf]
    %v458 = vld [vmem:[%s446 + $0x2c] sm:$0xf]
    %v459 = vld [vmem:[%s446 + $0x30] sm:$0xf]
    %v460 = vld [vmem:[%s446 + $0x34] sm:$0xf]
    %v461 = vld [vmem:[%s446 + $0x38] sm:$0xf]
    %v462 = vld [vmem:[%s446 + $0x3c] sm:$0xf]
    %v463 = vld [vmem:[%s3 + $0x2] sm:$0x1]
    %v464 = vlaneseq
    %v465 = vshrl.u32 %v464, 7
    %v466 = vsub.s32 0, %v465
    %v467 = vrot.slane %v463, %v466
    %v484 = vunpack.c.l.b16 %v447
    %v485 = vunpack.c.l.b16 %v448
    %v486 = vunpack.c.l.b16 %v449
    %v487 = vunpack.c.l.b16 %v450
    %v488 = vunpack.c.l.b16 %v451
    %v489 = vunpack.c.l.b16 %v452
    %v490 = vunpack.c.l.b16 %v453
    %v491 = vunpack.c.l.b16 %v454
    %v492 = vunpack.c.l.b16 %v455
    %v493 = vunpack.c.l.b16 %v456
    %v494 = vunpack.c.l.b16 %v457
    %v495 = vunpack.c.l.b16 %v458
    %v496 = vunpack.c.l.b16 %v459
    %v497 = vunpack.c.l.b16 %v460
    %v498 = vunpack.c.l.b16 %v461
    %v499 = vunpack.c.l.b16 %v462
    %v500 = vpack.c.b16 %v485, %v484
    %v501 = vpack.c.b16 %v487, %v486
    %v502 = vpack.c.b16 %v489, %v488
    %v503 = vpack.c.b16 %v491, %v490
    %v504 = vpack.c.b16 %v493, %v492
    %v505 = vpack.c.b16 %v495, %v494
    %v506 = vpack.c.b16 %v497, %v496
    %v507 = vpack.c.b16 %v499, %v498
    %516 = vmatprep.subr.bf16.mxu0 0
    %517 = vmatpush1.bf16.msra.mxu0 %v500
    %518 = vmatprep.subr.bf16.mxu0 0
    %519 = vmatpush1.bf16.msra.mxu0 %v501
    %520 = vmatprep.subr.bf16.mxu0 0
    %521 = vmatpush1.bf16.msra.mxu0 %v502
    %522 = vmatprep.subr.bf16.mxu0 0
    %523 = vmatpush1.bf16.msra.mxu0 %v503
    %524 = vmatprep.subr.bf16.mxu0 0
    %525 = vmatpush1.bf16.msra.mxu0 %v504
    %526 = vmatprep.subr.bf16.mxu0 0
    %527 = vmatpush1.bf16.msra.mxu0 %v505
    %528 = vmatprep.subr.bf16.mxu0 0
    %529 = vmatpush1.bf16.msra.mxu0 %v506
    %530 = vmatprep.subr.bf16.mxu0 0
    %531 = vmatpush1.bf16.msra.mxu0 %v507
    %532 = vmatprep.subr.bf16.mxu0 0
    %533 = vmatpush1.bf16.msra.mxu0 0
    %534 = vmatprep.subr.bf16.mxu0 0
    %535 = vmatpush1.bf16.msra.mxu0 0
    %536 = vmatprep.subr.bf16.mxu0 0
    %537 = vmatpush1.bf16.msra.mxu0 0
    %538 = vmatprep.subr.bf16.mxu0 0
    %539 = vmatpush1.bf16.msra.mxu0 0
    %540 = vmatprep.subr.bf16.mxu0 0
    %541 = vmatpush1.bf16.msra.mxu0 0
    %542 = vmatprep.subr.bf16.mxu0 0
    %543 = vmatpush1.bf16.msra.mxu0 0
    %544 = vmatprep.subr.bf16.mxu0 0
    %545 = vmatpush1.bf16.msra.mxu0 0
    %546 = vmatprep.subr.bf16.mxu0 0
    %547 = vmatpush1.bf16.msra.mxu0 0
    %548 = vmatprep.mubr.bf16.mxu0 0
    %549 = vmatmul.mubr.bf16.gmra.mrb[0].mxu0 %v438
    %v550 = vpop.f32.mrb[0].mxu0
    %v551 = vadd.f32 %v467, %v550
    %v552 = vpop.f32.mrb[0].mxu0
    %v553 = vpop.f32.mrb[0].mxu0
    %v554 = vadd.f32 %v467, %v553
    %v555 = vpop.f32.mrb[0].mxu0
    %556 = vmatprep.mubr.bf16.mxu0 0
    %557 = vmatmul.mubr.bf16.gmra.mrb[0].mxu0 %v439
    %v558 = vpop.f32.mrb[0].mxu0
    %v559 = vadd.f32 %v467, %v558
    %v560 = vpop.f32.mrb[0].mxu0
    %v561 = vpop.f32.mrb[0].mxu0
    %v562 = vadd.f32 %v467, %v561
    %v563 = vpop.f32.mrb[0].mxu0
    %564 = vmatprep.mubr.bf16.mxu0 0
    %565 = vmatmul.mubr.bf16.gmra.mrb[0].mxu0 %v440
    %v566 = vpop.f32.mrb[0].mxu0
    %v567 = vadd.f32 %v467, %v566
    %v568 = vpop.f32.mrb[0].mxu0
    %v569 = vpop.f32.mrb[0].mxu0
    %v570 = vadd.f32 %v467, %v569
    %v571 = vpop.f32.mrb[0].mxu0
    %572 = vmatprep.mubr.bf16.mxu0 0
    %573 = vmatmul.mubr.bf16.gmra.mrb[0].mxu0 %v441
    %v574 = vpop.f32.mrb[0].mxu0
    %v575 = vadd.f32 %v467, %v574
    %v576 = vpop.f32.mrb[0].mxu0
    %v577 = vpop.f32.mrb[0].mxu0
    %v578 = vadd.f32 %v467, %v577
    %v579 = vpop.f32.mrb[0].mxu0
    %580 = vmatprep.mubr.bf16.mxu0 0
    %581 = vmatmul.mubr.bf16.gmra.mrb[0].mxu0 %v442
    %v582 = vpop.f32.mrb[0].mxu0
    %v583 = vadd.f32 %v467, %v582
    %v584 = vpop.f32.mrb[0].mxu0
    %v585 = vpop.f32.mrb[0].mxu0
    %v586 = vadd.f32 %v467, %v585
    %v587 = vpop.f32.mrb[0].mxu0
    %588 = vmatprep.mubr.bf16.mxu0 0
    %589 = vmatmul.mubr.bf16.gmra.mrb[0].mxu0 %v443
    %v590 = vpop.f32.mrb[0].mxu0
    %v591 = vadd.f32 %v467, %v590
    %v592 = vpop.f32.mrb[0].mxu0
    %v593 = vpop.f32.mrb[0].mxu0
    %v594 = vadd.f32 %v467, %v593
    %v595 = vpop.f32.mrb[0].mxu0
    %596 = vmatprep.mubr.bf16.mxu0 0
    %597 = vmatmul.mubr.bf16.gmra.mrb[0].mxu0 %v444
    %v598 = vpop.f32.mrb[0].mxu0
    %v599 = vadd.f32 %v467, %v598
    %v600 = vpop.f32.mrb[0].mxu0
    %v601 = vpop.f32.mrb[0].mxu0
    %v602 = vadd.f32 %v467, %v601
    %v603 = vpop.f32.mrb[0].mxu0
    %604 = vmatprep.mubr.bf16.mxu0 0
    %605 = vmatmul.mubr.bf16.gmra.mrb[0].mxu0 %v445
    %v606 = vpop.f32.mrb[0].mxu0
    %v607 = vadd.f32 %v467, %v606
    %v608 = vpop.f32.mrb[0].mxu0
    %v609 = vpop.f32.mrb[0].mxu0
    %v610 = vadd.f32 %v467, %v609
    %v611 = vpop.f32.mrb[0].mxu0
    %612 = vdwg.mxu0
    %v613 = vmax.f32 %v551, 0.0
    %v614 = vmax.f32 %v554, 0.0
    %v615 = vmax.f32 %v559, 0.0
    %v616 = vmax.f32 %v562, 0.0
    %v617 = vmax.f32 %v567, 0.0
    %v618 = vmax.f32 %v570, 0.0
    %v619 = vmax.f32 %v575, 0.0
    %v620 = vmax.f32 %v578, 0.0
    %v621 = vmax.f32 %v583, 0.0
    %v622 = vmax.f32 %v586, 0.0
    %v623 = vmax.f32 %v591, 0.0
    %v624 = vmax.f32 %v594, 0.0
    %v625 = vmax.f32 %v599, 0.0
    %v626 = vmax.f32 %v602, 0.0
    %v627 = vmax.f32 %v607, 0.0
    %v628 = vmax.f32 %v610, 0.0
    %v629 = vpack.c.bf16 %v614, %v613
    %v630 = vpack.c.bf16 %v616, %v615
    %v631 = vpack.c.bf16 %v618, %v617
    %v632 = vpack.c.bf16 %v620, %v619
    %v633 = vpack.c.bf16 %v622, %v621
    %v634 = vpack.c.bf16 %v624, %v623
    %v635 = vpack.c.bf16 %v626, %v625
    %v636 = vpack.c.bf16 %v628, %v627
    %s637 = scalar_lea.vmem [#allocation2], 128
    %v638 = vld [vmem:[%s637] sm:$0xf]
    %v639 = vld [vmem:[%s637 + $0x4] sm:$0xf]
    %v640 = vld [vmem:[%s637 + $0x8] sm:$0xf]
    %v641 = vld [vmem:[%s637 + $0xc] sm:$0xf]
    %v642 = vld [vmem:[%s637 + $0x10] sm:$0xf]
    %v643 = vld [vmem:[%s637 + $0x14] sm:$0xf]
    %v644 = vld [vmem:[%s637 + $0x18] sm:$0xf]
    %v645 = vld [vmem:[%s637 + $0x1c] sm:$0xf]
    %v646 = vld [vmem:[%s637 + $0x20] sm:$0xf]
    %v647 = vld [vmem:[%s637 + $0x24] sm:$0xf]
    %v648 = vld [vmem:[%s637 + $0x28] sm:$0xf]
    %v649 = vld [vmem:[%s637 + $0x2c] sm:$0xf]
    %v650 = vld [vmem:[%s637 + $0x30] sm:$0xf]
    %v651 = vld [vmem:[%s637 + $0x34] sm:$0xf]
    %v652 = vld [vmem:[%s637 + $0x38] sm:$0xf]
    %v653 = vld [vmem:[%s637 + $0x3c] sm:$0xf]
    %v654 = vld [vmem:[%s3 + $0x3] sm:$0x1]
    %v655 = vlaneseq
    %v656 = vshrl.u32 %v655, 7
    %v657 = vsub.s32 0, %v656
    %v658 = vrot.slane %v654, %v657
    %v675 = vunpack.c.l.b16 %v638
    %v676 = vunpack.c.l.b16 %v639
    %v677 = vunpack.c.l.b16 %v640
    %v678 = vunpack.c.l.b16 %v641
    %v679 = vunpack.c.l.b16 %v642
    %v680 = vunpack.c.l.b16 %v643
    %v681 = vunpack.c.l.b16 %v644
    %v682 = vunpack.c.l.b16 %v645
    %v683 = vunpack.c.l.b16 %v646
    %v684 = vunpack.c.l.b16 %v647
    %v685 = vunpack.c.l.b16 %v648
    %v686 = vunpack.c.l.b16 %v649
    %v687 = vunpack.c.l.b16 %v650
    %v688 = vunpack.c.l.b16 %v651
    %v689 = vunpack.c.l.b16 %v652
    %v690 = vunpack.c.l.b16 %v653
    %v691 = vpack.c.b16 %v676, %v675
    %v692 = vpack.c.b16 %v678, %v677
    %v693 = vpack.c.b16 %v680, %v679
    %v694 = vpack.c.b16 %v682, %v681
    %v695 = vpack.c.b16 %v684, %v683
    %v696 = vpack.c.b16 %v686, %v685
    %v697 = vpack.c.b16 %v688, %v687
    %v698 = vpack.c.b16 %v690, %v689
    %707 = vmatprep.subr.bf16.mxu0 0
    %708 = vmatpush1.bf16.msra.mxu0 %v691
    %709 = vmatprep.subr.bf16.mxu0 0
    %710 = vmatpush1.bf16.msra.mxu0 %v692
    %711 = vmatprep.subr.bf16.mxu0 0
    %712 = vmatpush1.bf16.msra.mxu0 %v693
    %713 = vmatprep.subr.bf16.mxu0 0
    %714 = vmatpush1.bf16.msra.mxu0 %v694
    %715 = vmatprep.subr.bf16.mxu0 0
    %716 = vmatpush1.bf16.msra.mxu0 %v695
    %717 = vmatprep.subr.bf16.mxu0 0
    %718 = vmatpush1.bf16.msra.mxu0 %v696
    %719 = vmatprep.subr.bf16.mxu0 0
    %720 = vmatpush1.bf16.msra.mxu0 %v697
    %721 = vmatprep.subr.bf16.mxu0 0
    %722 = vmatpush1.bf16.msra.mxu0 %v698
    %723 = vmatprep.subr.bf16.mxu0 0
    %724 = vmatpush1.bf16.msra.mxu0 0
    %725 = vmatprep.subr.bf16.mxu0 0
    %726 = vmatpush1.bf16.msra.mxu0 0
    %727 = vmatprep.subr.bf16.mxu0 0
    %728 = vmatpush1.bf16.msra.mxu0 0
    %729 = vmatprep.subr.bf16.mxu0 0
    %730 = vmatpush1.bf16.msra.mxu0 0
    %731 = vmatprep.subr.bf16.mxu0 0
    %732 = vmatpush1.bf16.msra.mxu0 0
    %733 = vmatprep.subr.bf16.mxu0 0
    %734 = vmatpush1.bf16.msra.mxu0 0
    %735 = vmatprep.subr.bf16.mxu0 0
    %736 = vmatpush1.bf16.msra.mxu0 0
    %737 = vmatprep.subr.bf16.mxu0 0
    %738 = vmatpush1.bf16.msra.mxu0 0
    %739 = vmatprep.mubr.bf16.mxu0 0
    %740 = vmatmul.mubr.bf16.gmra.mrb[0].mxu0 %v629
    %v741 = vpop.f32.mrb[0].mxu0
    %v742 = vadd.f32 %v658, %v741
    %v743 = vpop.f32.mrb[0].mxu0
    %v744 = vpop.f32.mrb[0].mxu0
    %v745 = vadd.f32 %v658, %v744
    %v746 = vpop.f32.mrb[0].mxu0
    %747 = vmatprep.mubr.bf16.mxu0 0
    %748 = vmatmul.mubr.bf16.gmra.mrb[0].mxu0 %v630
    %v749 = vpop.f32.mrb[0].mxu0
    %v750 = vadd.f32 %v658, %v749
    %v751 = vpop.f32.mrb[0].mxu0
    %v752 = vpop.f32.mrb[0].mxu0
    %v753 = vadd.f32 %v658, %v752
    %v754 = vpop.f32.mrb[0].mxu0
    %755 = vmatprep.mubr.bf16.mxu0 0
    %756 = vmatmul.mubr.bf16.gmra.mrb[0].mxu0 %v631
    %v757 = vpop.f32.mrb[0].mxu0
    %v758 = vadd.f32 %v658, %v757
    %v759 = vpop.f32.mrb[0].mxu0
    %v760 = vpop.f32.mrb[0].mxu0
    %v761 = vadd.f32 %v658, %v760
    %v762 = vpop.f32.mrb[0].mxu0
    %763 = vmatprep.mubr.bf16.mxu0 0
    %764 = vmatmul.mubr.bf16.gmra.mrb[0].mxu0 %v632
    %v765 = vpop.f32.mrb[0].mxu0
    %v766 = vadd.f32 %v658, %v765
    %v767 = vpop.f32.mrb[0].mxu0
    %v768 = vpop.f32.mrb[0].mxu0
    %v769 = vadd.f32 %v658, %v768
    %v770 = vpop.f32.mrb[0].mxu0
    %771 = vmatprep.mubr.bf16.mxu0 0
    %772 = vmatmul.mubr.bf16.gmra.mrb[0].mxu0 %v633
    %v773 = vpop.f32.mrb[0].mxu0
    %v774 = vadd.f32 %v658, %v773
    %v775 = vpop.f32.mrb[0].mxu0
    %v776 = vpop.f32.mrb[0].mxu0
    %v777 = vadd.f32 %v658, %v776
    %v778 = vpop.f32.mrb[0].mxu0
    %779 = vmatprep.mubr.bf16.mxu0 0
    %780 = vmatmul.mubr.bf16.gmra.mrb[0].mxu0 %v634
    %v781 = vpop.f32.mrb[0].mxu0
    %v782 = vadd.f32 %v658, %v781
    %v783 = vpop.f32.mrb[0].mxu0
    %v784 = vpop.f32.mrb[0].mxu0
    %v785 = vadd.f32 %v658, %v784
    %v786 = vpop.f32.mrb[0].mxu0
    %787 = vmatprep.mubr.bf16.mxu0 0
    %788 = vmatmul.mubr.bf16.gmra.mrb[0].mxu0 %v635
    %v789 = vpop.f32.mrb[0].mxu0
    %v790 = vadd.f32 %v658, %v789
    %v791 = vpop.f32.mrb[0].mxu0
    %v792 = vpop.f32.mrb[0].mxu0
    %v793 = vadd.f32 %v658, %v792
    %v794 = vpop.f32.mrb[0].mxu0
    %795 = vmatprep.mubr.bf16.mxu0 0
    %796 = vmatmul.mubr.bf16.gmra.mrb[0].mxu0 %v636
    %v797 = vpop.f32.mrb[0].mxu0
    %v798 = vadd.f32 %v658, %v797
    %v799 = vpop.f32.mrb[0].mxu0
    %v800 = vpop.f32.mrb[0].mxu0
    %v801 = vadd.f32 %v658, %v800
    %v802 = vpop.f32.mrb[0].mxu0
    %803 = vdwg.mxu0
    %v804 = vmax.f32 %v742, 0.0
    %v805 = vmax.f32 %v745, 0.0
    %v806 = vmax.f32 %v750, 0.0
    %v807 = vmax.f32 %v753, 0.0
    %v808 = vmax.f32 %v758, 0.0
    %v809 = vmax.f32 %v761, 0.0
    %v810 = vmax.f32 %v766, 0.0
    %v811 = vmax.f32 %v769, 0.0
    %v812 = vmax.f32 %v774, 0.0
    %v813 = vmax.f32 %v777, 0.0
    %v814 = vmax.f32 %v782, 0.0
    %v815 = vmax.f32 %v785, 0.0
    %v816 = vmax.f32 %v790, 0.0
    %v817 = vmax.f32 %v793, 0.0
    %v818 = vmax.f32 %v798, 0.0
    %v819 = vmax.f32 %v801, 0.0
    %v820 = vpack.c.bf16 %v805, %v804
    %v821 = vpack.c.bf16 %v807, %v806
    %v822 = vpack.c.bf16 %v809, %v808
    %v823 = vpack.c.bf16 %v811, %v810
    %v824 = vpack.c.bf16 %v813, %v812
    %v825 = vpack.c.bf16 %v815, %v814
    %v826 = vpack.c.bf16 %v817, %v816
    %v827 = vpack.c.bf16 %v819, %v818
    %s828 = scalar_lea.vmem [#allocation2], 192
    %v829 = vld [vmem:[%s828] sm:$0xf]
    %v830 = vld [vmem:[%s828 + $0x4] sm:$0xf]
    %v831 = vld [vmem:[%s828 + $0x8] sm:$0xf]
    %v832 = vld [vmem:[%s828 + $0xc] sm:$0xf]
    %v833 = vld [vmem:[%s828 + $0x10] sm:$0xf]
    %v834 = vld [vmem:[%s828 + $0x14] sm:$0xf]
    %v835 = vld [vmem:[%s828 + $0x18] sm:$0xf]
    %v836 = vld [vmem:[%s828 + $0x1c] sm:$0xf]
    %v837 = vld [vmem:[%s828 + $0x20] sm:$0xf]
    %v838 = vld [vmem:[%s828 + $0x24] sm:$0xf]
    %v839 = vld [vmem:[%s828 + $0x28] sm:$0xf]
    %v840 = vld [vmem:[%s828 + $0x2c] sm:$0xf]
    %v841 = vld [vmem:[%s828 + $0x30] sm:$0xf]
    %v842 = vld [vmem:[%s828 + $0x34] sm:$0xf]
    %v843 = vld [vmem:[%s828 + $0x38] sm:$0xf]
    %v844 = vld [vmem:[%s828 + $0x3c] sm:$0xf]
    %v845 = vld [vmem:[%s3 + $0x4] sm:$0x1]
    %v846 = vlaneseq
    %v847 = vshrl.u32 %v846, 7
    %v848 = vsub.s32 0, %v847
    %v849 = vrot.slane %v845, %v848
    %v866 = vunpack.c.l.b16 %v829
    %v867 = vunpack.c.l.b16 %v830
    %v868 = vunpack.c.l.b16 %v831
    %v869 = vunpack.c.l.b16 %v832
    %v870 = vunpack.c.l.b16 %v833
    %v871 = vunpack.c.l.b16 %v834
    %v872 = vunpack.c.l.b16 %v835
    %v873 = vunpack.c.l.b16 %v836
    %v874 = vunpack.c.l.b16 %v837
    %v875 = vunpack.c.l.b16 %v838
    %v876 = vunpack.c.l.b16 %v839
    %v877 = vunpack.c.l.b16 %v840
    %v878 = vunpack.c.l.b16 %v841
    %v879 = vunpack.c.l.b16 %v842
    %v880 = vunpack.c.l.b16 %v843
    %v881 = vunpack.c.l.b16 %v844
    %v882 = vpack.c.b16 %v867, %v866
    %v883 = vpack.c.b16 %v869, %v868
    %v884 = vpack.c.b16 %v871, %v870
    %v885 = vpack.c.b16 %v873, %v872
    %v886 = vpack.c.b16 %v875, %v874
    %v887 = vpack.c.b16 %v877, %v876
    %v888 = vpack.c.b16 %v879, %v878
    %v889 = vpack.c.b16 %v881, %v880
    %898 = vmatprep.subr.bf16.mxu0 0
    %899 = vmatpush1.bf16.msra.mxu0 %v882
    %900 = vmatprep.subr.bf16.mxu0 0
    %901 = vmatpush1.bf16.msra.mxu0 %v883
    %902 = vmatprep.subr.bf16.mxu0 0
    %903 = vmatpush1.bf16.msra.mxu0 %v884
    %904 = vmatprep.subr.bf16.mxu0 0
    %905 = vmatpush1.bf16.msra.mxu0 %v885
    %906 = vmatprep.subr.bf16.mxu0 0
    %907 = vmatpush1.bf16.msra.mxu0 %v886
    %908 = vmatprep.subr.bf16.mxu0 0
    %909 = vmatpush1.bf16.msra.mxu0 %v887
    %910 = vmatprep.subr.bf16.mxu0 0
    %911 = vmatpush1.bf16.msra.mxu0 %v888
    %912 = vmatprep.subr.bf16.mxu0 0
    %913 = vmatpush1.bf16.msra.mxu0 %v889
    %914 = vmatprep.subr.bf16.mxu0 0
    %915 = vmatpush1.bf16.msra.mxu0 0
    %916 = vmatprep.subr.bf16.mxu0 0
    %917 = vmatpush1.bf16.msra.mxu0 0
    %918 = vmatprep.subr.bf16.mxu0 0
    %919 = vmatpush1.bf16.msra.mxu0 0
    %920 = vmatprep.subr.bf16.mxu0 0
    %921 = vmatpush1.bf16.msra.mxu0 0
    %922 = vmatprep.subr.bf16.mxu0 0
    %923 = vmatpush1.bf16.msra.mxu0 0
    %924 = vmatprep.subr.bf16.mxu0 0
    %925 = vmatpush1.bf16.msra.mxu0 0
    %926 = vmatprep.subr.bf16.mxu0 0
    %927 = vmatpush1.bf16.msra.mxu0 0
    %928 = vmatprep.subr.bf16.mxu0 0
    %929 = vmatpush1.bf16.msra.mxu0 0
    %930 = vmatprep.mubr.bf16.mxu0 0
    %931 = vmatmul.mubr.bf16.gmra.mrb[0].mxu0 %v820
    %v932 = vpop.f32.mrb[0].mxu0
    %v933 = vadd.f32 %v849, %v932
    %v934 = vpop.f32.mrb[0].mxu0
    %v935 = vpop.f32.mrb[0].mxu0
    %v936 = vadd.f32 %v849, %v935
    %v937 = vpop.f32.mrb[0].mxu0
    %938 = vmatprep.mubr.bf16.mxu0 0
    %939 = vmatmul.mubr.bf16.gmra.mrb[0].mxu0 %v821
    %v940 = vpop.f32.mrb[0].mxu0
    %v941 = vadd.f32 %v849, %v940
    %v942 = vpop.f32.mrb[0].mxu0
    %v943 = vpop.f32.mrb[0].mxu0
    %v944 = vadd.f32 %v849, %v943
    %v945 = vpop.f32.mrb[0].mxu0
    %946 = vmatprep.mubr.bf16.mxu0 0
    %947 = vmatmul.mubr.bf16.gmra.mrb[0].mxu0 %v822
    %v948 = vpop.f32.mrb[0].mxu0
    %v949 = vadd.f32 %v849, %v948
    %v950 = vpop.f32.mrb[0].mxu0
    %v951 = vpop.f32.mrb[0].mxu0
    %v952 = vadd.f32 %v849, %v951
    %v953 = vpop.f32.mrb[0].mxu0
    %954 = vmatprep.mubr.bf16.mxu0 0
    %955 = vmatmul.mubr.bf16.gmra.mrb[0].mxu0 %v823
    %v956 = vpop.f32.mrb[0].mxu0
    %v957 = vadd.f32 %v849, %v956
    %v958 = vpop.f32.mrb[0].mxu0
    %v959 = vpop.f32.mrb[0].mxu0
    %v960 = vadd.f32 %v849, %v959
    %v961 = vpop.f32.mrb[0].mxu0
    %962 = vmatprep.mubr.bf16.mxu0 0
    %963 = vmatmul.mubr.bf16.gmra.mrb[0].mxu0 %v824
    %v964 = vpop.f32.mrb[0].mxu0
    %v965 = vadd.f32 %v849, %v964
    %v966 = vpop.f32.mrb[0].mxu0
    %v967 = vpop.f32.mrb[0].mxu0
    %v968 = vadd.f32 %v849, %v967
    %v969 = vpop.f32.mrb[0].mxu0
    %970 = vmatprep.mubr.bf16.mxu0 0
    %971 = vmatmul.mubr.bf16.gmra.mrb[0].mxu0 %v825
    %v972 = vpop.f32.mrb[0].mxu0
    %v973 = vadd.f32 %v849, %v972
    %v974 = vpop.f32.mrb[0].mxu0
    %v975 = vpop.f32.mrb[0].mxu0
    %v976 = vadd.f32 %v849, %v975
    %v977 = vpop.f32.mrb[0].mxu0
    %978 = vmatprep.mubr.bf16.mxu0 0
    %979 = vmatmul.mubr.bf16.gmra.mrb[0].mxu0 %v826
    %v980 = vpop.f32.mrb[0].mxu0
    %v981 = vadd.f32 %v849, %v980
    %v982 = vpop.f32.mrb[0].mxu0
    %v983 = vpop.f32.mrb[0].mxu0
    %v984 = vadd.f32 %v849, %v983
    %v985 = vpop.f32.mrb[0].mxu0
    %986 = vmatprep.mubr.bf16.mxu0 0
    %987 = vmatmul.mubr.bf16.gmra.mrb[0].mxu0 %v827
    %v988 = vpop.f32.mrb[0].mxu0
    %v989 = vadd.f32 %v849, %v988
    %v990 = vpop.f32.mrb[0].mxu0
    %v991 = vpop.f32.mrb[0].mxu0
    %v992 = vadd.f32 %v849, %v991
    %v993 = vpop.f32.mrb[0].mxu0
    %994 = vdwg.mxu0
    %v995 = vmax.f32 %v933, 0.0
    %v996 = vmax.f32 %v936, 0.0
    %v997 = vmax.f32 %v941, 0.0
    %v998 = vmax.f32 %v944, 0.0
    %v999 = vmax.f32 %v949, 0.0
    %v1000 = vmax.f32 %v952, 0.0
    %v1001 = vmax.f32 %v957, 0.0
    %v1002 = vmax.f32 %v960, 0.0
    %v1003 = vmax.f32 %v965, 0.0
    %v1004 = vmax.f32 %v968, 0.0
    %v1005 = vmax.f32 %v973, 0.0
    %v1006 = vmax.f32 %v976, 0.0
    %v1007 = vmax.f32 %v981, 0.0
    %v1008 = vmax.f32 %v984, 0.0
    %v1009 = vmax.f32 %v989, 0.0
    %v1010 = vmax.f32 %v992, 0.0
    %v1011 = vld [vmem:[%s3 + $0x5] sm:$0x1]
    %v1012 = vld [vmem:[%s3 + $0x6] sm:$0x1]
    %v1013 = vlaneseq
    %v1014 = vshrl.u32 %v1013, 7
    %v1015 = vsub.s32 0, %v1014
    %v1016 = vrot.slane %v1011, %v1015
    %v1017 = vmul.f32 %v995, %v1016
    %v1018 = vmul.f32 %v996, %v1016
    %v1019 = vmul.f32 %v997, %v1016
    %v1020 = vmul.f32 %v998, %v1016
    %v1021 = vmul.f32 %v999, %v1016
    %v1022 = vmul.f32 %v1000, %v1016
    %v1023 = vmul.f32 %v1001, %v1016
    %v1024 = vmul.f32 %v1002, %v1016
    %v1025 = vmul.f32 %v1003, %v1016
    %v1026 = vmul.f32 %v1004, %v1016
    %v1027 = vmul.f32 %v1005, %v1016
    %v1028 = vmul.f32 %v1006, %v1016
    %v1029 = vmul.f32 %v1007, %v1016
    %v1030 = vmul.f32 %v1008, %v1016
    %v1031 = vmul.f32 %v1009, %v1016
    %v1032 = vmul.f32 %v1010, %v1016
    %1033 = vadd.xlane.f32.xlu0 %v1017
    %v1034 = vpop.xlane.xlu0 %1033
    %1035 = vadd.xlane.f32.xlu0 %v1018
    %v1036 = vpop.xlane.xlu0 %1035
    %1037 = vadd.xlane.f32.xlu0 %v1019
    %v1038 = vpop.xlane.xlu0 %1037
    %1039 = vadd.xlane.f32.xlu0 %v1020
    %v1040 = vpop.xlane.xlu0 %1039
    %1041 = vadd.xlane.f32.xlu0 %v1021
    %v1042 = vpop.xlane.xlu0 %1041
    %1043 = vadd.xlane.f32.xlu0 %v1022
    %v1044 = vpop.xlane.xlu0 %1043
    %1045 = vadd.xlane.f32.xlu0 %v1023
    %v1046 = vpop.xlane.xlu0 %1045
    %1047 = vadd.xlane.f32.xlu0 %v1024
    %v1048 = vpop.xlane.xlu0 %1047
    %1049 = vadd.xlane.f32.xlu0 %v1025
    %v1050 = vpop.xlane.xlu0 %1049
    %1051 = vadd.xlane.f32.xlu0 %v1026
    %v1052 = vpop.xlane.xlu0 %1051
    %1053 = vadd.xlane.f32.xlu0 %v1027
    %v1054 = vpop.xlane.xlu0 %1053
    %1055 = vadd.xlane.f32.xlu0 %v1028
    %v1056 = vpop.xlane.xlu0 %1055
    %1057 = vadd.xlane.f32.xlu0 %v1029
    %v1058 = vpop.xlane.xlu0 %1057
    %1059 = vadd.xlane.f32.xlu0 %v1030
    %v1060 = vpop.xlane.xlu0 %1059
    %1061 = vadd.xlane.f32.xlu0 %v1031
    %v1062 = vpop.xlane.xlu0 %1061
    %1063 = vadd.xlane.f32.xlu0 %v1032
    %v1064 = vpop.xlane.xlu0 %1063
    %v1066 = vlaneseq
    %v1067 = vshrl.u32 %v1066, 7
    %v1068 = vsub.s32 0, %v1067
    %v1069 = vrot.slane %v1012, %v1068
    %1071 = vbcast.lane.b32.xlu0 %v1069, 256
    %v1072 = vpop.permute.xlu0 %1071
    %s1074 = sor.u32 256, 8
    %1075 = vbcast.lane.b32.xlu0 %v1069, %s1074
    %v1076 = vpop.permute.xlu0 %1075
    %s1078 = sor.u32 256, 16
    %1079 = vbcast.lane.b32.xlu0 %v1069, %s1078
    %v1080 = vpop.permute.xlu0 %1079
    %s1082 = sor.u32 256, 24
    %1083 = vbcast.lane.b32.xlu0 %v1069, %s1082
    %v1084 = vpop.permute.xlu0 %1083
    %s1086 = sor.u32 256, 32
    %1087 = vbcast.lane.b32.xlu0 %v1069, %s1086
    %v1088 = vpop.permute.xlu0 %1087
    %s1090 = sor.u32 256, 40
    %1091 = vbcast.lane.b32.xlu0 %v1069, %s1090
    %v1092 = vpop.permute.xlu0 %1091
    %s1094 = sor.u32 256, 48
    %1095 = vbcast.lane.b32.xlu0 %v1069, %s1094
    %v1096 = vpop.permute.xlu0 %1095
    %s1098 = sor.u32 256, 56
    %1099 = vbcast.lane.b32.xlu0 %v1069, %s1098
    %v1100 = vpop.permute.xlu0 %1099
    %s1102 = sor.u32 256, 64
    %1103 = vbcast.lane.b32.xlu0 %v1069, %s1102
    %v1104 = vpop.permute.xlu0 %1103
    %s1106 = sor.u32 256, 72
    %1107 = vbcast.lane.b32.xlu0 %v1069, %s1106
    %v1108 = vpop.permute.xlu0 %1107
    %s1110 = sor.u32 256, 80
    %1111 = vbcast.lane.b32.xlu0 %v1069, %s1110
    %v1112 = vpop.permute.xlu0 %1111
    %s1114 = sor.u32 256, 88
    %1115 = vbcast.lane.b32.xlu0 %v1069, %s1114
    %v1116 = vpop.permute.xlu0 %1115
    %s1118 = sor.u32 256, 96
    %1119 = vbcast.lane.b32.xlu0 %v1069, %s1118
    %v1120 = vpop.permute.xlu0 %1119
    %s1122 = sor.u32 256, 104
    %1123 = vbcast.lane.b32.xlu0 %v1069, %s1122
    %v1124 = vpop.permute.xlu0 %1123
    %s1126 = sor.u32 256, 112
    %1127 = vbcast.lane.b32.xlu0 %v1069, %s1126
    %v1128 = vpop.permute.xlu0 %1127
    %s1130 = sor.u32 256, 120
    %1131 = vbcast.lane.b32.xlu0 %v1069, %s1130
    %v1132 = vpop.permute.xlu0 %1131
    %v1149 = vadd.f32 %v1034, %v1072
    %v1150 = vadd.f32 %v1036, %v1076
    %v1151 = vadd.f32 %v1038, %v1080
    %v1152 = vadd.f32 %v1040, %v1084
    %v1153 = vadd.f32 %v1042, %v1088
    %v1154 = vadd.f32 %v1044, %v1092
    %v1155 = vadd.f32 %v1046, %v1096
    %v1156 = vadd.f32 %v1048, %v1100
    %v1157 = vadd.f32 %v1050, %v1104
    %v1158 = vadd.f32 %v1052, %v1108
    %v1159 = vadd.f32 %v1054, %v1112
    %v1160 = vadd.f32 %v1056, %v1116
    %v1161 = vadd.f32 %v1058, %v1120
    %v1162 = vadd.f32 %v1060, %v1124
    %v1163 = vadd.f32 %v1062, %v1128
    %v1164 = vadd.f32 %v1064, %v1132
    %1181 = vset.pattern.permute.xlu0 0
    %1182 = vperm.xlu0 %1181, %v1149
    %v1183 = vpop.permute.xlu0 %1182
    %1184 = vset.pattern.permute.xlu0 0
    %1185 = vperm.xlu0 %1184, %v1150
    %v1186 = vpop.permute.xlu0 %1185
    %1187 = vset.pattern.permute.xlu0 0
    %1188 = vperm.xlu0 %1187, %v1151
    %v1189 = vpop.permute.xlu0 %1188
    %1190 = vset.pattern.permute.xlu0 0
    %1191 = vperm.xlu0 %1190, %v1152
    %v1192 = vpop.permute.xlu0 %1191
    %1193 = vset.pattern.permute.xlu0 0
    %1194 = vperm.xlu0 %1193, %v1153
    %v1195 = vpop.permute.xlu0 %1194
    %1196 = vset.pattern.permute.xlu0 0
    %1197 = vperm.xlu0 %1196, %v1154
    %v1198 = vpop.permute.xlu0 %1197
    %1199 = vset.pattern.permute.xlu0 0
    %1200 = vperm.xlu0 %1199, %v1155
    %v1201 = vpop.permute.xlu0 %1200
    %1202 = vset.pattern.permute.xlu0 0
    %1203 = vperm.xlu0 %1202, %v1156
    %v1204 = vpop.permute.xlu0 %1203
    %1205 = vset.pattern.permute.xlu0 0
    %1206 = vperm.xlu0 %1205, %v1157
    %v1207 = vpop.permute.xlu0 %1206
    %1208 = vset.pattern.permute.xlu0 0
    %1209 = vperm.xlu0 %1208, %v1158
    %v1210 = vpop.permute.xlu0 %1209
    %1211 = vset.pattern.permute.xlu0 0
    %1212 = vperm.xlu0 %1211, %v1159
    %v1213 = vpop.permute.xlu0 %1212
    %1214 = vset.pattern.permute.xlu0 0
    %1215 = vperm.xlu0 %1214, %v1160
    %v1216 = vpop.permute.xlu0 %1215
    %1217 = vset.pattern.permute.xlu0 0
    %1218 = vperm.xlu0 %1217, %v1161
    %v1219 = vpop.permute.xlu0 %1218
    %1220 = vset.pattern.permute.xlu0 0
    %1221 = vperm.xlu0 %1220, %v1162
    %v1222 = vpop.permute.xlu0 %1221
    %1223 = vset.pattern.permute.xlu0 0
    %1224 = vperm.xlu0 %1223, %v1163
    %v1225 = vpop.permute.xlu0 %1224
    %1226 = vset.pattern.permute.xlu0 0
    %1227 = vperm.xlu0 %1226, %v1164
    %v1228 = vpop.permute.xlu0 %1227
    %v1229 = vlaneseq
    %v1230 = vand.u32 %v1229, 127
    %v1231 = vlaneseq
    %v1232 = vshrl.u32 %v1231, 7
    %v1233 = vsub.s32 %v1230, %v1232
    %v1234 = vrot.slane %v1183, %v1233
    %v1235 = vadd.s32 %v1230, 4294967288
    %v1236 = vlaneseq
    %v1237 = vshrl.u32 %v1236, 7
    %v1238 = vsub.s32 %v1235, %v1237
    %v1239 = vrot.slane %v1186, %v1238
    %vm1240 = vcmask 130112
    %v1241 = vsel %vm1240, %v1239, %v1234
    %v1242 = vadd.s32 %v1230, 4294967280
    %v1243 = vlaneseq
    %v1244 = vshrl.u32 %v1243, 7
    %v1245 = vsub.s32 %v1242, %v1244
    %v1246 = vrot.slane %v1189, %v1245
    %vm1247 = vcmask 195712
    %v1248 = vsel %vm1247, %v1246, %v1241
    %v1249 = vadd.s32 %v1230, 4294967272
    %v1250 = vlaneseq
    %v1251 = vshrl.u32 %v1250, 7
    %v1252 = vsub.s32 %v1249, %v1251
    %v1253 = vrot.slane %v1192, %v1252
    %vm1254 = vcmask 261312
    %v1255 = vsel %vm1254, %v1253, %v1248
    %v1256 = vadd.s32 %v1230, 4294967264
    %v1257 = vlaneseq
    %v1258 = vshrl.u32 %v1257, 7
    %v1259 = vsub.s32 %v1256, %v1258
    %v1260 = vrot.slane %v1195, %v1259
    %vm1261 = vcmask 326912
    %v1262 = vsel %vm1261, %v1260, %v1255
    %v1263 = vadd.s32 %v1230, 4294967256
    %v1264 = vlaneseq
    %v1265 = vshrl.u32 %v1264, 7
    %v1266 = vsub.s32 %v1263, %v1265
    %v1267 = vrot.slane %v1198, %v1266
    %vm1268 = vcmask 392512
    %v1269 = vsel %vm1268, %v1267, %v1262
    %v1270 = vadd.s32 %v1230, 4294967248
    %v1271 = vlaneseq
    %v1272 = vshrl.u32 %v1271, 7
    %v1273 = vsub.s32 %v1270, %v1272
    %v1274 = vrot.slane %v1201, %v1273
    %vm1275 = vcmask 458112
    %v1276 = vsel %vm1275, %v1274, %v1269
    %v1277 = vadd.s32 %v1230, 4294967240
    %v1278 = vlaneseq
    %v1279 = vshrl.u32 %v1278, 7
    %v1280 = vsub.s32 %v1277, %v1279
    %v1281 = vrot.slane %v1204, %v1280
    %vm1282 = vcmask 523712
    %v1283 = vsel %vm1282, %v1281, %v1276
    %v1284 = vadd.s32 %v1230, 4294967232
    %v1285 = vlaneseq
    %v1286 = vshrl.u32 %v1285, 7
    %v1287 = vsub.s32 %v1284, %v1286
    %v1288 = vrot.slane %v1207, %v1287
    %vm1289 = vcmask 589312
    %v1290 = vsel %vm1289, %v1288, %v1283
    %v1291 = vadd.s32 %v1230, 4294967224
    %v1292 = vlaneseq
    %v1293 = vshrl.u32 %v1292, 7
    %v1294 = vsub.s32 %v1291, %v1293
    %v1295 = vrot.slane %v1210, %v1294
    %vm1296 = vcmask 654912
    %v1297 = vsel %vm1296, %v1295, %v1290
    %v1298 = vadd.s32 %v1230, 4294967216
    %v1299 = vlaneseq
    %v1300 = vshrl.u32 %v1299, 7
    %v1301 = vsub.s32 %v1298, %v1300
    %v1302 = vrot.slane %v1213, %v1301
    %vm1303 = vcmask 720512
    %v1304 = vsel %vm1303, %v1302, %v1297
    %v1305 = vadd.s32 %v1230, 4294967208
    %v1306 = vlaneseq
    %v1307 = vshrl.u32 %v1306, 7
    %v1308 = vsub.s32 %v1305, %v1307
    %v1309 = vrot.slane %v1216, %v1308
    %vm1310 = vcmask 786112
    %v1311 = vsel %vm1310, %v1309, %v1304
    %v1312 = vadd.s32 %v1230, 4294967200
    %v1313 = vlaneseq
    %v1314 = vshrl.u32 %v1313, 7
    %v1315 = vsub.s32 %v1312, %v1314
    %v1316 = vrot.slane %v1219, %v1315
    %vm1317 = vcmask 851712
    %v1318 = vsel %vm1317, %v1316, %v1311
    %v1319 = vadd.s32 %v1230, 4294967192
    %v1320 = vlaneseq
    %v1321 = vshrl.u32 %v1320, 7
    %v1322 = vsub.s32 %v1319, %v1321
    %v1323 = vrot.slane %v1222, %v1322
    %vm1324 = vcmask 917312
    %v1325 = vsel %vm1324, %v1323, %v1318
    %v1326 = vadd.s32 %v1230, 4294967184
    %v1327 = vlaneseq
    %v1328 = vshrl.u32 %v1327, 7
    %v1329 = vsub.s32 %v1326, %v1328
    %v1330 = vrot.slane %v1225, %v1329
    %vm1331 = vcmask 982912
    %v1332 = vsel %vm1331, %v1330, %v1325
    %v1333 = vadd.s32 %v1230, 4294967176
    %v1334 = vlaneseq
    %v1335 = vshrl.u32 %v1334, 7
    %v1336 = vsub.s32 %v1333, %v1335
    %v1337 = vrot.slane %v1228, %v1336
    %vm1338 = vcmask 1048512
    %v1339 = vsel %vm1338, %v1337, %v1332
    %1341 = vst [vmem:[#allocation5] sm:$0x1] %v1339
    // Predicated region
    $region22: #{tpu_custom_call.1} parent=1 // pred_check
      _
    $region23: #{tpu_custom_call.1} parent=1 // pred_check_branch
      %1343 = sbr.rel (0) target = $region25
    $region24: #{tpu_custom_call.1} parent=1 // pred_region
      %s1345 = ssub.s32 16, 16
      %1346 = vsyncadd [#allocation4], %s1345
      %s1348 = sshll.u32 [#allocation5], 4
      %s1349 = int_to_ptr.vmem [resolvable:$true] %s1348
      %1351 = dma.vmem_to_hbm [thread:$0]  %s1349, 16, %s4, [#allocation4]
    $region25: #{tpu_custom_call.1} parent=1 // pred_fallthru
      _
    // Predicated region
    $region26: #{tpu_custom_call.1} parent=1 // pred_check
      _
    $region27: #{tpu_custom_call.1} parent=1 // pred_check_branch
      %1353 = sbr.rel (0) target = $region29
    $region28: #{tpu_custom_call.1} parent=1 // pred_region
      %1354 = dma.done [#allocation4], 16
    $region29: #{tpu_custom_call.1} parent=1 // pred_fallthru
      _
    %1355 = vsyncpa [#allocation3], 1
    %1356 = vsyncpa [#allocation4], 1

</llo_original>
